<compile_context>
chip_gen: v6e
topology: v6e:2x2x1
jax: 0.10.0
libtpu: 0.0.40
codegen_flags: <defaults>
</compile_context>

<pallas_src>
import functools

import jax
import jax.numpy as jnp
from jax.experimental import pallas as pl
from jax.experimental.pallas import tpu as pltpu


def _round_up(n, m):
    return ((n + m - 1) // m) * m


def _cdiv(a, b):
    return -(-a // b)


def _vmem_capacity_bytes():
    try:
        info = pltpu.get_tpu_info()
        cap = int(getattr(info, "vmem_capacity_bytes", 0))
        if cap > 0:
            return cap
    except Exception:
        pass
    return 64 * 1024 * 1024          # conservative fallback: v7x per-TC physical VMEM


def _ste_autoencoder_kernel(x_ref, we_ref, be_ref, wd_ref, bd_ref,
                            y_ref, ploss_ref, *, n_valid_rows, tile_rows):
    x = x_ref[...]                                              # (TB, Dp) float32

    # Encoder: z = x @ W_enc + b_enc  (MXU, low-precision inputs, fp32 accumulation).
    z = jnp.dot(x.astype(we_ref.dtype), we_ref[...],
                preferred_element_type=jnp.float32) + be_ref[...]

    # Binary quantise forward value: (0 < z) * 2 - 1.
    # ST proxies (tanh/hardtanh/softsign/linear) only change the backward pass, so the
    # forward value is identical for every st_estimator choice.
    # NOTE: padded hidden lanes (H..Hp) have z == 0 -> q == -1; this is harmless because
    # the matching rows of the padded W_dec are zero-filled (prepare_params invariant).
    q = jnp.where(z > 0.0, 1.0, -1.0).astype(wd_ref.dtype)      # exactly +/-1, lossless cast

    # Decoder: y = q @ W_dec + b_dec  (MXU).
    y = jnp.dot(q, wd_ref[...], preferred_element_type=jnp.float32) + bd_ref[...]
    y_ref[...] = y.astype(y_ref.dtype)

    # Partial (unnormalised) squared error for this batch tile.  The scalar is spread as
    # part/1024 over a lane-dense (8,128) tile so the wrapper does a contiguous sum.
    diff = x - y
    sq = diff * diff
    row0 = pl.program_id(0) * tile_rows
    inv_lanes = 1.0 / 1024.0

    @pl.when(row0 + tile_rows <= n_valid_rows)        # full tile: no row mask needed
    def _():
        ploss_ref[...] = jnp.full((8, 128), jnp.sum(sq) * inv_lanes, jnp.float32)

    @pl.when(row0 + tile_rows > n_valid_rows)         # ragged last tile: mask OOB rows
    def _():
        row_id = jax.lax.broadcasted_iota(jnp.int32, (tile_rows, 1), 0) + row0
        masked = jnp.where(row_id < n_valid_rows, sq, 0.0)
        ploss_ref[...] = jnp.full((8, 128), jnp.sum(masked) * inv_lanes, jnp.float32)


def prepare_params(w_enc, b_enc, w_dec, b_dec, *, matmul_dtype=jnp.bfloat16):
    """Pad + cast the weights ONCE (hoisted out of the per-call forward path)."""
    D_in, H = w_enc.shape
    assert w_dec.shape == (H, D_in)
    Dp, Hp = _round_up(D_in, 128), _round_up(H, 128)
    f32 = jnp.float32
    wep = jnp.zeros((Dp, Hp), matmul_dtype).at[:D_in, :H].set(w_enc.astype(matmul_dtype))
    bep = jnp.zeros((1, Hp), f32).at[0, :H].set(jnp.reshape(b_enc, (-1,)).astype(f32))
    # Rows H..Hp of W_dec stay zero -> padded hidden lanes (where q == -1) contribute nothing.
    wdp = jnp.zeros((Hp, Dp), matmul_dtype).at[:H, :D_in].set(w_dec.astype(matmul_dtype))
    bdp = jnp.zeros((1, Dp), f32).at[0, :D_in].set(jnp.reshape(b_dec, (-1,)).astype(f32))
    return dict(wep=wep, bep=bep, wdp=wdp, bdp=bdp, input_size=D_in, hidden_size=H)


def ste_autoencoder_forward(x, params, *, batch_tile=None):
    """x:(B, D_in) float32; params from prepare_params.  Returns (y, mse_loss)."""
    wep, bep, wdp, bdp = params["wep"], params["bep"], params["wdp"], params["bdp"]
    D_in = params["input_size"]
    Dp, Hp = wep.shape
    B = x.shape[0]
    assert x.shape == (B, D_in)
    f32 = jnp.float32
    itm = jnp.dtype(wep.dtype).itemsize

    # --- VMEM budget per generation (v5e/v6e: 128 MiB -> ~96 MiB; v7x: 64 MiB -> ~48 MiB). ---
    cap = _vmem_capacity_bytes()
    budget = (cap * 3) // 4

    def _vmem_bytes(tb):
        # x2: BlockSpec pipelining double-buffers every operand, even index-invariant weights.
        weights = 2 * ((Dp * Hp + Hp * Dp) * itm + (Hp + Dp) * 4)
        xy_io = 2 * (tb * Dp * 4) * 2                  # x in + y out tiles, double-buffered
        ploss_io = 2 * (8 * 128 * 4)
        temps = tb * Hp * (4 + itm) + tb * Dp * 4 * 2  # z, q, diff/sq fp32 temporaries
        return weights + xy_io + ploss_io + temps

    resident_w = 2 * ((Dp * Hp + Hp * Dp) * itm + (Hp + Dp) * 4)
    if resident_w > budget:
        # TODO(synk): add a hidden-dim-tiled weight-streaming path (extra "arbitrary" grid axis
        # + fp32 VMEM accumulator) for widths whose resident weights exceed VMEM (v7x first).
        raise NotImplementedError(
            f"resident weights ({resident_w / 2**20:.1f} MiB) exceed the VMEM budget "
            f"({budget / 2**20:.1f} MiB); weight-tiled fallback not implemented yet")

    # --- Batch tile: scale with the feature width (target ~4 MiB x tile), 8-aligned. ---
    if batch_tile is None:
        target = 4 * 1024 * 1024
        TB = max(8, min(_round_up(B, 8), (target // (Dp * 4)) // 8 * 8))
    else:
        TB = max(8, _round_up(min(batch_tile, _round_up(B, 8)), 8))
    while TB > 8 and _vmem_bytes(TB) > budget:
        TB = max(8, _round_up(TB // 2, 8))

    num_tiles = _cdiv(B, TB)
    # Megacore balance (v7x: 2 TCs share the "parallel" axis): prefer an even tile count.
    if num_tiles > 1 and num_tiles % 2 == 1:
        tb2 = _round_up(max(8, _cdiv(B, num_tiles + 1)), 8)
        nt2 = _cdiv(B, tb2)
        if nt2 % 2 == 0 and _vmem_bytes(tb2) <= budget:
            TB, num_tiles = tb2, nt2

    vmem_limit = int(min(max(32 * 1024 * 1024, int(1.25 * _vmem_bytes(TB))),
                         (cap * 82) // 100))

    # --- Pad x only when the feature dim needs it.  The ragged last BATCH tile is handled
    # in-kernel (OOB rows masked out of the loss; OOB output rows dropped on writeback), so
    # the aligned case costs zero extra HBM passes over x / y. ---
    if D_in != Dp:
        xk = jnp.pad(x.astype(f32), ((0, 0), (0, Dp - D_in)))
    else:
        xk = x.astype(f32)

    kernel = functools.partial(_ste_autoencoder_kernel, n_valid_rows=B, tile_rows=TB)

    y_full, ploss = pl.pallas_call(
        kernel,
        out_shape=(jax.ShapeDtypeStruct((B, Dp), f32),
                   jax.ShapeDtypeStruct((num_tiles * 8, 128), f32)),
        grid=(num_tiles,),
        in_specs=[
            pl.BlockSpec((TB, Dp), lambda i: (i, 0)),     # x: tiled over batch (ragged edge ok)
            pl.BlockSpec((Dp, Hp), lambda i: (0, 0)),     # W_enc: resident
            pl.BlockSpec((1, Hp), lambda i: (0, 0)),      # b_enc: resident
            pl.BlockSpec((Hp, Dp), lambda i: (0, 0)),     # W_dec: resident
            pl.BlockSpec((1, Dp), lambda i: (0, 0)),      # b_dec: resident
        ],
        out_specs=(
            pl.BlockSpec((TB, Dp), lambda i: (i, 0)),     # y: tiled over batch
            pl.BlockSpec((8, 128), lambda i: (i, 0)),     # per-tile partial loss
        ),
        compiler_params=pltpu.CompilerParams(
            dimension_semantics=("parallel",),            # megacore over batch tiles
            vmem_limit_bytes=vmem_limit,
        ),
    )(xk, wep, bep, wdp, bdp)

    y = y_full if D_in == Dp else y_full[:, :D_in]
    if y.dtype != x.dtype:
        y = y.astype(x.dtype)
    loss = jnp.sum(ploss) / jnp.float32(B * D_in)         # divide by TRUE element count
    return y, loss


def ste_autoencoder(x, w_enc, b_enc, w_dec, b_dec, *,
                    matmul_dtype=jnp.bfloat16, batch_tile=None):
    """Convenience one-shot wrapper; prefer prepare_params(...) + forward for repeated calls."""
    params = prepare_params(w_enc, b_enc, w_dec, b_dec, matmul_dtype=matmul_dtype)
    return ste_autoencoder_forward(x, params, batch_tile=batch_tile)


def _reference(x, w_enc, b_enc, w_dec, b_dec, matmul_dtype=None):
    md = x.dtype if matmul_dtype is None else matmul_dtype
    xf = x.astype(jnp.float32)
    z = jnp.dot(x.astype(md), w_enc.astype(md),
                preferred_element_type=jnp.float32) + b_enc.reshape(1, -1).astype(jnp.float32)
    q = jnp.where(z > 0, 1.0, -1.0).astype(md)
    y = jnp.dot(q, w_dec.astype(md),
                preferred_element_type=jnp.float32) + b_dec.reshape(1, -1).astype(jnp.float32)
    return y, jnp.mean((xf - y) ** 2)


if __name__ == "__main__":
    # --- Test 1: module-consistent small shapes, fp32 matmul path. ---
    batch, input_size, hidden_size = 8, 32, 64
    key = jax.random.PRNGKey(0)
    k_x, k_we, k_be, k_wd, k_bd = jax.random.split(key, 5)

    enc_bound = 1.0 / jnp.sqrt(jnp.float32(input_size))
    dec_bound = 1.0 / jnp.sqrt(jnp.float32(hidden_size))

    x = jax.random.normal(k_x, (batch, input_size), dtype=jnp.float32)
    w_enc = jax.random.uniform(k_we, (input_size, hidden_size), jnp.float32, -enc_bound, enc_bound)
    b_enc = jax.random.uniform(k_be, (1, hidden_size), jnp.float32, -enc_bound, enc_bound)
    w_dec = jax.random.uniform(k_wd, (hidden_size, input_size), jnp.float32, -dec_bound, dec_bound)
    b_dec = jax.random.uniform(k_bd, (1, input_size), jnp.float32, -dec_bound, dec_bound)

    y, loss = ste_autoencoder(x, w_enc, b_enc, w_dec, b_dec, matmul_dtype=jnp.float32)
    jax.block_until_ready((y, loss))
    y_ref, loss_ref = _reference(x, w_enc, b_enc, w_dec, b_dec)
    assert y.shape == (batch, input_size)
    # NOTE: jnp.dot at default precision on TPU uses reduced-precision MXU passes even for
    # f32 operands; the reference uses the same, so this check is consistency, not true fp32.
    assert jnp.allclose(y, y_ref, atol=1e-5, rtol=1e-5)
    assert jnp.allclose(loss, loss_ref, atol=1e-5, rtol=1e-5)

    # --- Test 2: multi-tile ragged batch + default bf16 MXU path with hoisted weight prep. ---
    params_bf16 = prepare_params(w_enc, b_enc, w_dec, b_dec)        # cast/pad weights ONCE
    big_batch = 600
    x2 = jax.random.normal(jax.random.PRNGKey(1), (big_batch, input_size), dtype=jnp.float32)
    # batch_tile=256 would give 3 tiles -> rebalanced to 4 even tiles (ragged last tile masked).
    y2, loss2 = ste_autoencoder_forward(x2, params_bf16, batch_tile=256)
    jax.block_until_ready((y2, loss2))
    y2_bf, loss2_bf = _reference(x2, w_enc, b_enc, w_dec, b_dec, matmul_dtype=jnp.bfloat16)
    _, loss2_f32 = _reference(x2, w_enc, b_enc, w_dec, b_dec)
    assert y2.shape == (big_batch, input_size)
    # Robust checks (tolerant to rare quantisation sign flips from accumulation order).
    assert float(jnp.mean(jnp.abs(y2 - y2_bf))) < 2e-3
    assert jnp.allclose(loss2, loss2_bf, rtol=2e-3, atol=1e-4)
    assert jnp.allclose(loss2, loss2_f32, rtol=5e-2, atol=5e-2)

    # --- Test 3: lane/sublane-aligned shapes -> zero wrapper-side pad/slice passes. ---
    b3, d3, h3 = 512, 128, 256
    k3 = jax.random.split(jax.random.PRNGKey(2), 5)
    eb3 = 1.0 / jnp.sqrt(jnp.float32(d3))
    db3 = 1.0 / jnp.sqrt(jnp.float32(h3))
    x3 = jax.random.normal(k3[0], (b3, d3), dtype=jnp.float32)
    we3 = jax.random.uniform(k3[1], (d3, h3), jnp.float32, -eb3, eb3)
    be3 = jax.random.uniform(k3[2], (1, h3), jnp.float32, -eb3, eb3)
    wd3 = jax.random.uniform(k3[3], (h3, d3), jnp.float32, -db3, db3)
    bd3 = jax.random.uniform(k3[4], (1, d3), jnp.float32, -db3, db3)
    params3 = prepare_params(we3, be3, wd3, bd3)
    y3, loss3 = ste_autoencoder_forward(x3, params3, batch_tile=128)   # 4 even tiles, no padding
    jax.block_until_ready((y3, loss3))
    y3_bf, loss3_bf = _reference(x3, we3, be3, wd3, bd3, matmul_dtype=jnp.bfloat16)
    assert y3.shape == (b3, d3)
    assert float(jnp.mean(jnp.abs(y3 - y3_bf))) < 2e-3
    assert jnp.allclose(loss3, loss3_bf, rtol=5e-3, atol=1e-3)

    print("KERNEL_OK")
</pallas_src>

<mosaic_0001>
module attributes {stable_mosaic.version = 11 : i64} {
  func.func @_ste_autoencoder_kernel(%arg0: i32, %arg1: memref<8x128xf32, #tpu.memory_space<vmem>>, %arg2: memref<128x128xf32, #tpu.memory_space<vmem>>, %arg3: memref<1x128xf32, #tpu.memory_space<vmem>>, %arg4: memref<128x128xf32, #tpu.memory_space<vmem>>, %arg5: memref<1x128xf32, #tpu.memory_space<vmem>>, %arg6: memref<8x128xf32, #tpu.memory_space<vmem>>, %arg7: memref<8x128xf32, #tpu.memory_space<vmem>>) attributes {dimension_semantics = [#tpu.dimension_semantics<parallel>], iteration_bounds = array<i64: 1>, scalar_prefetch = 0 : i64, scratch_operands = 0 : i64, tpu.core_type = #tpu.core_type<tc>, window_params = [{transform_indices = @transform_0, window_bounds = array<i64: 8, 128>}, {pipeline_mode = #tpu.pipeline_mode<synchronous>, transform_indices = @transform_1, window_bounds = array<i64: 128, 128>}, {pipeline_mode = #tpu.pipeline_mode<synchronous>, transform_indices = @transform_2, window_bounds = array<i64: 1, 128>}, {pipeline_mode = #tpu.pipeline_mode<synchronous>, transform_indices = @transform_3, window_bounds = array<i64: 128, 128>}, {pipeline_mode = #tpu.pipeline_mode<synchronous>, transform_indices = @transform_4, window_bounds = array<i64: 1, 128>}, {transform_indices = @transform_5, window_bounds = array<i64: 8, 128>}, {transform_indices = @transform_6, window_bounds = array<i64: 8, 128>}]} {
    %c0 = arith.constant 0 : index
    %c0_0 = arith.constant 0 : index
    %0 = vector.load %arg1[%c0, %c0_0] : memref<8x128xf32, #tpu.memory_space<vmem>>, vector<8x128xf32>
    %c0_1 = arith.constant 0 : index
    %c0_2 = arith.constant 0 : index
    %1 = vector.load %arg2[%c0_1, %c0_2] : memref<128x128xf32, #tpu.memory_space<vmem>>, vector<128x128xf32>
    %cst = arith.constant dense<0.000000e+00> : vector<8x128xf32>
    %2 = tpu.matmul %0, %1, %cst {dimension_numbers = #tpu.dot_dimension_numbers<[1], [0], [0], [1], [0, 0, 1, 1], [], []>} : vector<8x128xf32>, vector<128x128xf32>, vector<8x128xf32> -> vector<8x128xf32>
    %c0_3 = arith.constant 0 : index
    %c0_4 = arith.constant 0 : index
    %3 = vector.load %arg3[%c0_3, %c0_4] : memref<1x128xf32, #tpu.memory_space<vmem>>, vector<1x128xf32>
    %4 = vector.broadcast %3 : vector<1x128xf32> to vector<8x128xf32>
    %5 = arith.addf %2, %4 : vector<8x128xf32>
    %cst_5 = arith.constant 0.000000e+00 : f32
    %6 = vector.broadcast %cst_5 : f32 to vector<8x128xf32>
    %7 = arith.cmpf ogt, %5, %6 : vector<8x128xf32>
    %cst_6 = arith.constant 1.000000e+00 : f32
    %cst_7 = arith.constant -1.000000e+00 : f32
    %8 = vector.broadcast %cst_6 : f32 to vector<8x128xf32>
    %9 = vector.broadcast %cst_7 : f32 to vector<8x128xf32>
    %10 = arith.select %7, %8, %9 : vector<8x128xi1>, vector<8x128xf32>
    %c0_8 = arith.constant 0 : index
    %c0_9 = arith.constant 0 : index
    %11 = vector.load %arg4[%c0_8, %c0_9] : memref<128x128xf32, #tpu.memory_space<vmem>>, vector<128x128xf32>
    %cst_10 = arith.constant dense<0.000000e+00> : vector<8x128xf32>
    %12 = tpu.matmul %10, %11, %cst_10 {dimension_numbers = #tpu.dot_dimension_numbers<[1], [0], [0], [1], [0, 0, 1, 1], [], []>} : vector<8x128xf32>, vector<128x128xf32>, vector<8x128xf32> -> vector<8x128xf32>
    %c0_11 = arith.constant 0 : index
    %c0_12 = arith.constant 0 : index
    %13 = vector.load %arg5[%c0_11, %c0_12] : memref<1x128xf32, #tpu.memory_space<vmem>>, vector<1x128xf32>
    %14 = vector.broadcast %13 : vector<1x128xf32> to vector<8x128xf32>
    %15 = arith.addf %12, %14 : vector<8x128xf32>
    %c0_13 = arith.constant 0 : index
    %c0_14 = arith.constant 0 : index
    %16 = vector.load %arg6[%c0_13, %c0_14] : memref<8x128xf32, #tpu.memory_space<vmem>>, vector<8x128xf32>
    tpu.vector_store %arg6[%c0_13, %c0_14], %15 {strides = array<i32>} : memref<8x128xf32, #tpu.memory_space<vmem>>, vector<8x128xf32>,
    %17 = arith.subf %0, %15 : vector<8x128xf32>
    %18 = arith.mulf %17, %17 : vector<8x128xf32>
    %c8_i32 = arith.constant 8 : i32
    %19 = arith.muli %arg0, %c8_i32 : i32
    %c8_i32_15 = arith.constant 8 : i32
    %20 = arith.addi %19, %c8_i32_15 : i32
    %c8_i32_16 = arith.constant 8 : i32
    %21 = arith.cmpi sle, %20, %c8_i32_16 : i32
    %22 = arith.extui %21 : i1 to i32
    %c0_i32 = arith.constant 0 : i32
    %23 = arith.cmpi ne, %22, %c0_i32 : i32
    scf.if %23 {
      %28 = vector.shape_cast %18 : vector<8x128xf32> to vector<1x8x128xf32>
      %cst_20 = arith.constant dense<0.000000e+00> : vector<1xf32>
      %29 = vector.multi_reduction <add>, %28, %cst_20 [1, 2] : vector<1x8x128xf32> to vector<1xf32>
      %30 = vector.shape_cast %29 : vector<1xf32> to vector<1x1x1xf32>
      %31 = vector.extract %30[0, 0, 0] : f32 from vector<1x1x1xf32>
      %cst_21 = arith.constant 9.765625E-4 : f32
      %32 = arith.mulf %31, %cst_21 : f32
      %33 = vector.broadcast %32 : f32 to vector<8x128xf32>
      %c0_22 = arith.constant 0 : index
      %c0_23 = arith.constant 0 : index
      %34 = vector.load %arg7[%c0_22, %c0_23] : memref<8x128xf32, #tpu.memory_space<vmem>>, vector<8x128xf32>
      tpu.vector_store %arg7[%c0_22, %c0_23], %33 {strides = array<i32>} : memref<8x128xf32, #tpu.memory_space<vmem>>, vector<8x128xf32>,
    } else {
    }
    %c8_i32_17 = arith.constant 8 : i32
    %24 = arith.addi %19, %c8_i32_17 : i32
    %c8_i32_18 = arith.constant 8 : i32
    %25 = arith.cmpi sgt, %24, %c8_i32_18 : i32
    %26 = arith.extui %25 : i1 to i32
    %c0_i32_19 = arith.constant 0 : i32
    %27 = arith.cmpi ne, %26, %c0_i32_19 : i32
    scf.if %27 {
      %28 = tpu.iota {dimensions = array<i32: 0>} : vector<8x1xi32>
      %29 = vector.broadcast %19 : i32 to vector<8x1xi32>
      %30 = arith.addi %28, %29 : vector<8x1xi32>
      %c8_i32_20 = arith.constant 8 : i32
      %31 = vector.broadcast %c8_i32_20 : i32 to vector<8x1xi32>
      %32 = arith.cmpi slt, %30, %31 : vector<8x1xi32>
      %cst_21 = arith.constant 0.000000e+00 : f32
      %33 = vector.shape_cast %32 : vector<8x1xi1> to vector<8x1xi1>
      %34 = vector.broadcast %33 : vector<8x1xi1> to vector<8x128xi1>
      %35 = vector.broadcast %cst_21 : f32 to vector<8x128xf32>
      %36 = arith.select %34, %18, %35 : vector<8x128xi1>, vector<8x128xf32>
      %37 = vector.shape_cast %36 : vector<8x128xf32> to vector<1x8x128xf32>
      %cst_22 = arith.constant dense<0.000000e+00> : vector<1xf32>
      %38 = vector.multi_reduction <add>, %37, %cst_22 [1, 2] : vector<1x8x128xf32> to vector<1xf32>
      %39 = vector.shape_cast %38 : vector<1xf32> to vector<1x1x1xf32>
      %40 = vector.extract %39[0, 0, 0] : f32 from vector<1x1x1xf32>
      %cst_23 = arith.constant 9.765625E-4 : f32
      %41 = arith.mulf %40, %cst_23 : f32
      %42 = vector.broadcast %41 : f32 to vector<8x128xf32>
      %c0_24 = arith.constant 0 : index
      %c0_25 = arith.constant 0 : index
      %43 = vector.load %arg7[%c0_24, %c0_25] : memref<8x128xf32, #tpu.memory_space<vmem>>, vector<8x128xf32>
      tpu.vector_store %arg7[%c0_24, %c0_25], %42 {strides = array<i32>} : memref<8x128xf32, #tpu.memory_space<vmem>>, vector<8x128xf32>,
    } else {
    }
    return
  }
  func.func @transform_0(%arg0: i32) -> (i32, i32) {
    %c0_i32 = arith.constant 0 : i32
    %c0_i32_0 = arith.constant 0 : i32
    return %arg0, %c0_i32 : i32, i32
  }
  func.func @transform_1(%arg0: i32) -> (i32, i32) {
    %c0_i32 = arith.constant 0 : i32
    %c0_i32_0 = arith.constant 0 : i32
    %c0_i32_1 = arith.constant 0 : i32
    return %c0_i32, %c0_i32_0 : i32, i32
  }
  func.func @transform_2(%arg0: i32) -> (i32, i32) {
    %c0_i32 = arith.constant 0 : i32
    %c0_i32_0 = arith.constant 0 : i32
    %c0_i32_1 = arith.constant 0 : i32
    return %c0_i32, %c0_i32_0 : i32, i32
  }
  func.func @transform_3(%arg0: i32) -> (i32, i32) {
    %c0_i32 = arith.constant 0 : i32
    %c0_i32_0 = arith.constant 0 : i32
    %c0_i32_1 = arith.constant 0 : i32
    return %c0_i32, %c0_i32_0 : i32, i32
  }
  func.func @transform_4(%arg0: i32) -> (i32, i32) {
    %c0_i32 = arith.constant 0 : i32
    %c0_i32_0 = arith.constant 0 : i32
    %c0_i32_1 = arith.constant 0 : i32
    return %c0_i32, %c0_i32_0 : i32, i32
  }
  func.func @transform_5(%arg0: i32) -> (i32, i32) {
    %c0_i32 = arith.constant 0 : i32
    %c0_i32_0 = arith.constant 0 : i32
    return %arg0, %c0_i32 : i32, i32
  }
  func.func @transform_6(%arg0: i32) -> (i32, i32) {
    %c0_i32 = arith.constant 0 : i32
    %c0_i32_0 = arith.constant 0 : i32
    return %arg0, %c0_i32 : i32, i32
  }
}

</mosaic_0001>

<llo_original>
// kernel: tpu_custom_call.1
$region0: #{tpu_custom_call.1}
  #allocation0 [shape = 'u32[]', space=smem, size = 0x4, offset = 0x4, fixed_abs, tag = 'smem constant byte address 0x4 - core index']
  #allocation1 [shape = 'u32[144,128]{1,0:T(1,128)}', space=vmem, size = 0x12000, scoped, tag = 'internal scratch']
  %s0 = inlined_call_operand.hbm [shape: f32[8,128], index: 0, kind: input, shape index: {}]
  %s1 = inlined_call_operand.hbm [shape: f32[128,128], index: 1, kind: input, shape index: {}]
  %s2 = inlined_call_operand.vmem [shape: f32[1,128], index: 2, kind: input, shape index: {}]
  %s3 = inlined_call_operand.hbm [shape: f32[128,128], index: 3, kind: input, shape index: {}]
  %s4 = inlined_call_operand.vmem [shape: f32[1,128], index: 4, kind: input, shape index: {}]
  %s5 = inlined_call_operand.hbm [shape: f32[8,128], index: 5, kind: output, shape index: {0}]
  %s6 = inlined_call_operand.hbm [shape: f32[8,128], index: 6, kind: output, shape index: {1}]
  %7 = xla_tuple %s5, %s6
  %s8 = sld [smem:[#allocation0]]
  $region58: #{tpu_custom_call.1} parent=0
    _
  %s10 = ssub.s32 1, %s8
  %s11 = scalar_select 0, %s10, %s8
  $region1: #{tpu_custom_call.1} parent=0
    #allocation2 [shape = 'u8[4096]{0}', space=vmem, size = 0x1000, scoped, tag = 'input window, operand 0, single buffered']
    #allocation3 [shape = 's32[1]{0}', space=sflag, size = 0x4, scoped, tag = 'scoped memory for tpu_custom_call.1']
    #allocation4 [shape = 's32[1]{0}', space=sflag, size = 0x4, scoped, tag = 'scoped memory for tpu_custom_call.1']
    #allocation5 [shape = 'u8[65536]{0}', space=vmem, size = 0x10000, scoped, tag = 'input window, operand 1, single buffered']
    #allocation6 [shape = 's32[1]{0}', space=sflag, size = 0x4, scoped, tag = 'scoped memory for tpu_custom_call.1']
    #allocation7 [shape = 'u8[65536]{0}', space=vmem, size = 0x10000, scoped, tag = 'input window, operand 3, single buffered']
    #allocation8 [shape = 'u8[4096]{0}', space=vmem, size = 0x1000, scoped, tag = 'output window, operand 0, single buffered']
    #allocation9 [shape = 'u8[4096]{0}', space=vmem, size = 0x1000, scoped, tag = 'output window, operand 1, single buffered']
    #allocation10 [shape = 's32[1]{0}', space=sflag, size = 0x4, scoped, tag = 'scoped memory for tpu_custom_call.1']
    %12 = vsyncpa [#allocation3], 0
    %13 = vsyncpa [#allocation6], 0
    %14 = vsyncpa [#allocation4], 0
    %15 = vsyncpa [#allocation10], 0
    // Predicated region
    $region2: #{tpu_custom_call.1} parent=1 // pred_check
      _
    $region3: #{tpu_custom_call.1} parent=1 // pred_check_branch
      %17 = sbr.rel (0) target = $region5
    $region4: #{tpu_custom_call.1} parent=1 // pred_region
      %s19 = ssub.s32 128, 128
      %20 = vsyncadd [#allocation3], %s19
      %s22 = sshll.u32 [#allocation2], 4
      %s23 = int_to_ptr.vmem [resolvable:$true] %s22
      %25 = dma.hbm_to_vmem [thread:$0]  %s0, 128, %s23, [#allocation3]
    $region5: #{tpu_custom_call.1} parent=1 // pred_fallthru
      _
    // Predicated region
    $region6: #{tpu_custom_call.1} parent=1 // pred_check
      _
    $region7: #{tpu_custom_call.1} parent=1 // pred_check_branch
      %27 = sbr.rel (0) target = $region9
    $region8: #{tpu_custom_call.1} parent=1 // pred_region
      %s29 = ssub.s32 2048, 2048
      %30 = vsyncadd [#allocation6], %s29
      %s31 = sshll.u32 [#allocation5], 4
      %s32 = int_to_ptr.vmem [resolvable:$true] %s31
      %37 = dma.hbm_to_vmem [thread:$0]  %s1, 2048, %s32, [#allocation6], 128, 128, 8
    $region9: #{tpu_custom_call.1} parent=1 // pred_fallthru
      _
    // Predicated region
    $region10: #{tpu_custom_call.1} parent=1 // pred_check
      _
    $region11: #{tpu_custom_call.1} parent=1 // pred_check_branch
      %39 = sbr.rel (0) target = $region13
    $region12: #{tpu_custom_call.1} parent=1 // pred_region
      _
    $region13: #{tpu_custom_call.1} parent=1 // pred_fallthru
      _
    // Predicated region
    $region14: #{tpu_custom_call.1} parent=1 // pred_check
      _
    $region15: #{tpu_custom_call.1} parent=1 // pred_check_branch
      %41 = sbr.rel (0) target = $region17
    $region16: #{tpu_custom_call.1} parent=1 // pred_region
      %s43 = ssub.s32 2048, 2048
      %44 = vsyncadd [#allocation6], %s43
      %s45 = sshll.u32 [#allocation7], 4
      %s46 = int_to_ptr.vmem [resolvable:$true] %s45
      %51 = dma.hbm_to_vmem [thread:$0]  %s3, 2048, %s46, [#allocation6], 128, 128, 8
    $region17: #{tpu_custom_call.1} parent=1 // pred_fallthru
      _
    // Predicated region
    $region18: #{tpu_custom_call.1} parent=1 // pred_check
      _
    $region19: #{tpu_custom_call.1} parent=1 // pred_check_branch
      %53 = sbr.rel (0) target = $region21
    $region20: #{tpu_custom_call.1} parent=1 // pred_region
      _
    $region21: #{tpu_custom_call.1} parent=1 // pred_fallthru
      _
    // Predicated region
    $region22: #{tpu_custom_call.1} parent=1 // pred_check
      _
    $region23: #{tpu_custom_call.1} parent=1 // pred_check_branch
      %55 = sbr.rel (0) target = $region25
    $region24: #{tpu_custom_call.1} parent=1 // pred_region
      %56 = dma.done [#allocation3], 128
    $region25: #{tpu_custom_call.1} parent=1 // pred_fallthru
      _
    // Predicated region
    $region26: #{tpu_custom_call.1} parent=1 // pred_check
      _
    $region27: #{tpu_custom_call.1} parent=1 // pred_check_branch
      %58 = sbr.rel (0) target = $region29
    $region28: #{tpu_custom_call.1} parent=1 // pred_region
      %59 = dma.done [#allocation6], 2048
    $region29: #{tpu_custom_call.1} parent=1 // pred_fallthru
      _
    // Predicated region
    $region30: #{tpu_custom_call.1} parent=1 // pred_check
      _
    $region31: #{tpu_custom_call.1} parent=1 // pred_check_branch
      %61 = sbr.rel (0) target = $region33
    $region32: #{tpu_custom_call.1} parent=1 // pred_region
      %62 = dma.done [#allocation6], 2048
    $region33: #{tpu_custom_call.1} parent=1 // pred_fallthru
      _
    %v63 = vld [vmem:[#allocation2] sm:$0xff]
    %v64 = vld [vmem:[#allocation5] sm:$0xff]
    %v65 = vld [vmem:[#allocation5 + $0x8] sm:$0xff]
    %v66 = vld [vmem:[#allocation5 + $0x10] sm:$0xff]
    %v67 = vld [vmem:[#allocation5 + $0x18] sm:$0xff]
    %v68 = vld [vmem:[#allocation5 + $0x20] sm:$0xff]
    %v69 = vld [vmem:[#allocation5 + $0x28] sm:$0xff]
    %v70 = vld [vmem:[#allocation5 + $0x30] sm:$0xff]
    %v71 = vld [vmem:[#allocation5 + $0x38] sm:$0xff]
    %v72 = vld [vmem:[#allocation5 + $0x40] sm:$0xff]
    %v73 = vld [vmem:[#allocation5 + $0x48] sm:$0xff]
    %v74 = vld [vmem:[#allocation5 + $0x50] sm:$0xff]
    %v75 = vld [vmem:[#allocation5 + $0x58] sm:$0xff]
    %v76 = vld [vmem:[#allocation5 + $0x60] sm:$0xff]
    %v77 = vld [vmem:[#allocation5 + $0x68] sm:$0xff]
    %v78 = vld [vmem:[#allocation5 + $0x70] sm:$0xff]
    %v79 = vld [vmem:[#allocation5 + $0x78] sm:$0xff]
    %v80 = vld [vmem:[%s2] sm:$0x1]
    %v82 = vlaneseq
    %v83 = vshrl.u32 %v82, 7
    %v84 = vsub.s32 0, %v83
    %v85 = vrot.slane %v80, %v84
    %87 = vmatprep.subr.mxu0 0.0
    %88 = vmatpush1.msra.mxu0 %v79
    %89 = vmatprep.subr.mxu0 0.0
    %90 = vmatpush1.msra.mxu0 %v78
    %91 = vmatprep.subr.mxu0 0.0
    %92 = vmatpush1.msra.mxu0 %v77
    %93 = vmatprep.subr.mxu0 0.0
    %94 = vmatpush1.msra.mxu0 %v76
    %95 = vmatprep.subr.mxu0 0.0
    %96 = vmatpush1.msra.mxu0 %v75
    %97 = vmatprep.subr.mxu0 0.0
    %98 = vmatpush1.msra.mxu0 %v74
    %99 = vmatprep.subr.mxu0 0.0
    %100 = vmatpush1.msra.mxu0 %v73
    %101 = vmatprep.subr.mxu0 0.0
    %102 = vmatpush1.msra.mxu0 %v72
    %103 = vmatprep.subr.mxu0 0.0
    %104 = vmatpush1.msra.mxu0 %v71
    %105 = vmatprep.subr.mxu0 0.0
    %106 = vmatpush1.msra.mxu0 %v70
    %107 = vmatprep.subr.mxu0 0.0
    %108 = vmatpush1.msra.mxu0 %v69
    %109 = vmatprep.subr.mxu0 0.0
    %110 = vmatpush1.msra.mxu0 %v68
    %111 = vmatprep.subr.mxu0 0.0
    %112 = vmatpush1.msra.mxu0 %v67
    %113 = vmatprep.subr.mxu0 0.0
    %114 = vmatpush1.msra.mxu0 %v66
    %115 = vmatprep.subr.mxu0 0.0
    %116 = vmatpush1.msra.mxu0 %v65
    %117 = vmatprep.subr.mxu0 0.0
    %118 = vmatpush1.msra.mxu0 %v64
    %119 = vmatprep.subr.mxu0 0.0
    %120 = vmatpush2.msra.mxu0 0.0
    %121 = vmatprep.subr.mxu0 0.0
    %122 = vmatpush2.msra.mxu0 0.0
    %123 = vmatprep.subr.mxu0 0.0
    %124 = vmatpush2.msra.mxu0 0.0
    %125 = vmatprep.subr.mxu0 0.0
    %126 = vmatpush2.msra.mxu0 0.0
    %127 = vmatprep.subr.mxu0 0.0
    %128 = vmatpush2.msra.mxu0 0.0
    %129 = vmatprep.subr.mxu0 0.0
    %130 = vmatpush2.msra.mxu0 0.0
    %131 = vmatprep.subr.mxu0 0.0
    %132 = vmatpush2.msra.mxu0 0.0
    %133 = vmatprep.subr.mxu0 0.0
    %134 = vmatpush2.msra.mxu0 0.0
    %135 = vmatprep.subr.mxu0 0.0
    %136 = vmatpush2.msra.mxu0 0.0
    %137 = vmatprep.subr.mxu0 0.0
    %138 = vmatpush2.msra.mxu0 0.0
    %139 = vmatprep.subr.mxu0 0.0
    %140 = vmatpush2.msra.mxu0 0.0
    %141 = vmatprep.subr.mxu0 0.0
    %142 = vmatpush2.msra.mxu0 0.0
    %143 = vmatprep.subr.mxu0 0.0
    %144 = vmatpush2.msra.mxu0 0.0
    %145 = vmatprep.subr.mxu0 0.0
    %146 = vmatpush2.msra.mxu0 0.0
    %147 = vmatprep.subr.mxu0 0.0
    %148 = vmatpush2.msra.mxu0 0.0
    %149 = vmatprep.subr.mxu0 0.0
    %150 = vmatpush2.msra.mxu0 0.0
    %151 = vmatprep.mubr.f32.mxu0 0.0
    %152 = vmatmul.mubr.f32.gmra.mxu0 %v63
    %v153 = vpop.f32.mrf.mxu0
    %v154 = vadd.f32 %v85, %v153
    %v155 = vpop.f32.mrf.mxu0
    %156 = vdwg.mxu0
    %vm157 = vcmp.gt.f32.partialorder %v154, 0.0
    %v158 = vsel %vm157, 1.0, -1.0
    %v159 = vld [vmem:[#allocation7] sm:$0xff]
    %v160 = vld [vmem:[#allocation7 + $0x8] sm:$0xff]
    %v161 = vld [vmem:[#allocation7 + $0x10] sm:$0xff]
    %v162 = vld [vmem:[#allocation7 + $0x18] sm:$0xff]
    %v163 = vld [vmem:[#allocation7 + $0x20] sm:$0xff]
    %v164 = vld [vmem:[#allocation7 + $0x28] sm:$0xff]
    %v165 = vld [vmem:[#allocation7 + $0x30] sm:$0xff]
    %v166 = vld [vmem:[#allocation7 + $0x38] sm:$0xff]
    %v167 = vld [vmem:[#allocation7 + $0x40] sm:$0xff]
    %v168 = vld [vmem:[#allocation7 + $0x48] sm:$0xff]
    %v169 = vld [vmem:[#allocation7 + $0x50] sm:$0xff]
    %v170 = vld [vmem:[#allocation7 + $0x58] sm:$0xff]
    %v171 = vld [vmem:[#allocation7 + $0x60] sm:$0xff]
    %v172 = vld [vmem:[#allocation7 + $0x68] sm:$0xff]
    %v173 = vld [vmem:[#allocation7 + $0x70] sm:$0xff]
    %v174 = vld [vmem:[#allocation7 + $0x78] sm:$0xff]
    %v175 = vld [vmem:[%s4] sm:$0x1]
    %v177 = vlaneseq
    %v178 = vshrl.u32 %v177, 7
    %v179 = vsub.s32 0, %v178
    %v180 = vrot.slane %v175, %v179
    %182 = vmatprep.subr.mxu0 0.0
    %183 = vmatpush1.msra.mxu0 %v174
    %184 = vmatprep.subr.mxu0 0.0
    %185 = vmatpush1.msra.mxu0 %v173
    %186 = vmatprep.subr.mxu0 0.0
    %187 = vmatpush1.msra.mxu0 %v172
    %188 = vmatprep.subr.mxu0 0.0
    %189 = vmatpush1.msra.mxu0 %v171
    %190 = vmatprep.subr.mxu0 0.0
    %191 = vmatpush1.msra.mxu0 %v170
    %192 = vmatprep.subr.mxu0 0.0
    %193 = vmatpush1.msra.mxu0 %v169
    %194 = vmatprep.subr.mxu0 0.0
    %195 = vmatpush1.msra.mxu0 %v168
    %196 = vmatprep.subr.mxu0 0.0
    %197 = vmatpush1.msra.mxu0 %v167
    %198 = vmatprep.subr.mxu0 0.0
    %199 = vmatpush1.msra.mxu0 %v166
    %200 = vmatprep.subr.mxu0 0.0
    %201 = vmatpush1.msra.mxu0 %v165
    %202 = vmatprep.subr.mxu0 0.0
    %203 = vmatpush1.msra.mxu0 %v164
    %204 = vmatprep.subr.mxu0 0.0
    %205 = vmatpush1.msra.mxu0 %v163
    %206 = vmatprep.subr.mxu0 0.0
    %207 = vmatpush1.msra.mxu0 %v162
    %208 = vmatprep.subr.mxu0 0.0
    %209 = vmatpush1.msra.mxu0 %v161
    %210 = vmatprep.subr.mxu0 0.0
    %211 = vmatpush1.msra.mxu0 %v160
    %212 = vmatprep.subr.mxu0 0.0
    %213 = vmatpush1.msra.mxu0 %v159
    %214 = vmatprep.subr.mxu0 0.0
    %215 = vmatpush2.msra.mxu0 0.0
    %216 = vmatprep.subr.mxu0 0.0
    %217 = vmatpush2.msra.mxu0 0.0
    %218 = vmatprep.subr.mxu0 0.0
    %219 = vmatpush2.msra.mxu0 0.0
    %220 = vmatprep.subr.mxu0 0.0
    %221 = vmatpush2.msra.mxu0 0.0
    %222 = vmatprep.subr.mxu0 0.0
    %223 = vmatpush2.msra.mxu0 0.0
    %224 = vmatprep.subr.mxu0 0.0
    %225 = vmatpush2.msra.mxu0 0.0
    %226 = vmatprep.subr.mxu0 0.0
    %227 = vmatpush2.msra.mxu0 0.0
    %228 = vmatprep.subr.mxu0 0.0
    %229 = vmatpush2.msra.mxu0 0.0
    %230 = vmatprep.subr.mxu0 0.0
    %231 = vmatpush2.msra.mxu0 0.0
    %232 = vmatprep.subr.mxu0 0.0
    %233 = vmatpush2.msra.mxu0 0.0
    %234 = vmatprep.subr.mxu0 0.0
    %235 = vmatpush2.msra.mxu0 0.0
    %236 = vmatprep.subr.mxu0 0.0
    %237 = vmatpush2.msra.mxu0 0.0
    %238 = vmatprep.subr.mxu0 0.0
    %239 = vmatpush2.msra.mxu0 0.0
    %240 = vmatprep.subr.mxu0 0.0
    %241 = vmatpush2.msra.mxu0 0.0
    %242 = vmatprep.subr.mxu0 0.0
    %243 = vmatpush2.msra.mxu0 0.0
    %244 = vmatprep.subr.mxu0 0.0
    %245 = vmatpush2.msra.mxu0 0.0
    %246 = vmatprep.mubr.f32.mxu0 0.0
    %247 = vmatmul.mubr.f32.gmra.mxu0 %v158
    %v248 = vpop.f32.mrf.mxu0
    %v249 = vadd.f32 %v180, %v248
    %v250 = vpop.f32.mrf.mxu0
    %251 = vdwg.mxu0
    %252 = vst [vmem:[#allocation8] sm:$0xff] %v249
    %v253 = vsub.f32 %v63, %v249
    %v254 = vmul.f32 %v253, %v253
    %s255 = smul.u32 0, 8
    %s256 = sadd.s32 %s255, 8
    %p257 = scmp.le.s32.totalorder %s256, 8
    // Predicated region
    $region34: #{tpu_custom_call.1} parent=1 // pred_check
      %p258 = pneg %p257
    $region35: #{tpu_custom_call.1} parent=1 // pred_check_branch
      %260 = sbr.rel (%p258) target = $region37
    $region36: #{tpu_custom_call.1} parent=1 // pred_region
      %261 = vadd.xlane.f32.xlu0 %v254
      %v262 = vpop.xlane.xlu0 %261
      %v263 = vrot.slane %v262, 4
      %v264 = vadd.f32 %v262, %v263
      %v265 = vrot.slane %v264, 2
      %v266 = vadd.f32 %v264, %v265
      %v267 = vrot.slane %v266, 1
      %v268 = vadd.f32 %v266, %v267
      %s269 = vtos %v268
      %s270 = smul.f32 %s269, 0.0009765625
      %v271 = vstv %s270
      %272 = vst [vmem:[#allocation9] sm:$0xff] %v271
    $region37: #{tpu_custom_call.1} parent=1 // pred_fallthru
      _
    %p273 = scmp.gt.s32.totalorder %s256, 8
    // Predicated region
    $region38: #{tpu_custom_call.1} parent=1 // pred_check
      %p274 = pneg %p273
    $region39: #{tpu_custom_call.1} parent=1 // pred_check_branch
      %276 = sbr.rel (%p274) target = $region41
    $region40: #{tpu_custom_call.1} parent=1 // pred_region
      %v277 = vlaneseq
      %v278 = vshrl.u32 %v277, 7
      %v279 = vstv %s255
      %v280 = vadd.s32 %v278, %v279
      %vm281 = vcmp.lt.s32.totalorder %v280, 8
      %v282 = vsel %vm281, 1, 0
      %vm283 = vcmp.eq.s32.totalorder %v282, 1
      %v284 = vsel %vm283, %v254, 0.0
      %285 = vadd.xlane.f32.xlu0 %v284
      %v286 = vpop.xlane.xlu0 %285
      %v287 = vrot.slane %v286, 4
      %v288 = vadd.f32 %v286, %v287
      %v289 = vrot.slane %v288, 2
      %v290 = vadd.f32 %v288, %v289
      %v291 = vrot.slane %v290, 1
      %v292 = vadd.f32 %v290, %v291
      %s293 = vtos %v292
      %s294 = smul.f32 %s293, 0.0009765625
      %v295 = vstv %s294
      %296 = vst [vmem:[#allocation9] sm:$0xff] %v295
    $region41: #{tpu_custom_call.1} parent=1 // pred_fallthru
      _
    // Predicated region
    $region42: #{tpu_custom_call.1} parent=1 // pred_check
      _
    $region43: #{tpu_custom_call.1} parent=1 // pred_check_branch
      %298 = sbr.rel (0) target = $region45
    $region44: #{tpu_custom_call.1} parent=1 // pred_region
      %s300 = ssub.s32 128, 128
      %301 = vsyncadd [#allocation4], %s300
      %s303 = sshll.u32 [#allocation8], 4
      %s304 = int_to_ptr.vmem [resolvable:$true] %s303
      %306 = dma.vmem_to_hbm [thread:$0]  %s304, 128, %s5, [#allocation4]
    $region45: #{tpu_custom_call.1} parent=1 // pred_fallthru
      _
    // Predicated region
    $region46: #{tpu_custom_call.1} parent=1 // pred_check
      _
    $region47: #{tpu_custom_call.1} parent=1 // pred_check_branch
      %308 = sbr.rel (0) target = $region49
    $region48: #{tpu_custom_call.1} parent=1 // pred_region
      %s310 = ssub.s32 128, 128
      %311 = vsyncadd [#allocation10], %s310
      %s313 = sshll.u32 [#allocation9], 4
      %s314 = int_to_ptr.vmem [resolvable:$true] %s313
      %316 = dma.vmem_to_hbm [thread:$0]  %s314, 128, %s6, [#allocation10]
    $region49: #{tpu_custom_call.1} parent=1 // pred_fallthru
      _
    // Predicated region
    $region50: #{tpu_custom_call.1} parent=1 // pred_check
      _
    $region51: #{tpu_custom_call.1} parent=1 // pred_check_branch
      %318 = sbr.rel (0) target = $region53
    $region52: #{tpu_custom_call.1} parent=1 // pred_region
      %319 = dma.done [#allocation4], 128
    $region53: #{tpu_custom_call.1} parent=1 // pred_fallthru
      _
    // Predicated region
    $region54: #{tpu_custom_call.1} parent=1 // pred_check
      _
    $region55: #{tpu_custom_call.1} parent=1 // pred_check_branch
      %321 = sbr.rel (0) target = $region57
    $region56: #{tpu_custom_call.1} parent=1 // pred_region
      %322 = dma.done [#allocation10], 128
    $region57: #{tpu_custom_call.1} parent=1 // pred_fallthru
      _
    %323 = vsyncpa [#allocation3], 1
    %324 = vsyncpa [#allocation6], 1
    %325 = vsyncpa [#allocation4], 1
    %326 = vsyncpa [#allocation10], 1

</llo_original>
